<compile_context>
chip_gen: v5e
topology: v5e:2x2
jax: 0.10.0
libtpu: 0.0.40
codegen_flags: <defaults>
</compile_context>

<pallas_src>
import jax
import jax.numpy as jnp
from jax.experimental import pallas as pl
from jax.experimental.pallas import tpu as pltpu

LANE = 128  # TPU lane width; only the tiny resident weights are padded to this.


def _round_up(n, m):
    return ((n + m - 1) // m) * m


def _cdiv(a, b):
    return (a + b - 1) // b


def mlp_kernel(x_ref, w1_ref, b1_ref, w2_ref, b2_ref, o_ref):
    # One batch tile per grid step. x / o are narrow (full feature dim), the
    # hidden activation is lane-dense (padded to 128) via the padded weights.
    x = x_ref[...]                                                     # (TB, in_dim)
    h = jnp.dot(x, w1_ref[...], preferred_element_type=jnp.float32)    # (TB, hid_p)
    h = jnp.maximum(h + b1_ref[...], 0.0)                              # bias + ReLU
    o = jnp.dot(h, w2_ref[...], preferred_element_type=jnp.float32)    # (TB, out_dim)
    o_ref[...] = (o + b2_ref[...]).astype(o_ref.dtype)


def simple_model_forward(x, w1, b1, w2, b2, *, batch_tile=4096,
                         small_batch_fallback=4096):
    """Pallas forward of SimpleModel.

    x : (B, input_dim) float32
    w1: (input_dim, hidden_dim), b1: (hidden_dim,)
    w2: (hidden_dim, output_dim), b2: (output_dim,)
    Returns (B, output_dim) float32, identical to relu(x@w1+b1)@w2+b2.
    """
    B, in_dim = x.shape
    hidden_dim = w1.shape[1]
    out_dim = w2.shape[1]

    # Below a few thousand rows the pallas_call custom-call overhead dominates;
    # let XLA fuse the plain expression instead.
    if B < small_batch_fallback:
        return jnp.maximum(x @ w1 + b1, 0.0) @ w2 + b2

    # Only the hidden dim is padded (weights are tiny and stay VMEM-resident).
    hid_p = _round_up(hidden_dim, LANE)

    # Batch: pad only to the sublane multiple (8); partial last tile is fine.
    Bp = _round_up(B, 8)
    TB = max(8, min(_round_up(batch_tile, 8), Bp))
    # Guarantee >=2 grid tiles when possible so the "parallel" batch axis can be
    # sharded across both TensorCores on v7x (no-op on v5e/v6e).
    if Bp // TB < 2 and Bp >= 16:
        TB = _round_up(_cdiv(Bp, 2), 8)
    n_tiles = _cdiv(Bp, TB)

    x_p = jnp.pad(x, ((0, Bp - B), (0, 0))) if Bp != B else x
    w1_p = jnp.pad(w1, ((0, 0), (0, hid_p - hidden_dim)))
    b1_p = jnp.pad(b1.reshape(1, hidden_dim), ((0, 0), (0, hid_p - hidden_dim)))
    w2_p = jnp.pad(w2, ((0, hid_p - hidden_dim), (0, 0)))
    b2_p = b2.reshape(1, out_dim)

    out = pl.pallas_call(
        mlp_kernel,
        out_shape=jax.ShapeDtypeStruct((Bp, out_dim), x.dtype),
        grid=(n_tiles,),
        in_specs=[
            # x: tiled over batch; feature dim = full array dim -> no lane padding
            # in HBM (the (8,128) rule only applies to non-full block dims).
            pl.BlockSpec((TB, in_dim), lambda i: (i, 0)),
            pl.BlockSpec((in_dim, hid_p), lambda i: (0, 0)),   # w1: VMEM-resident
            pl.BlockSpec((1, hid_p), lambda i: (0, 0)),        # b1
            pl.BlockSpec((hid_p, out_dim), lambda i: (0, 0)),  # w2
            pl.BlockSpec((1, out_dim), lambda i: (0, 0)),      # b2
        ],
        # Narrow output in HBM: writeback DMA only moves the real out_dim columns.
        out_specs=pl.BlockSpec((TB, out_dim), lambda i: (i, 0)),
        compiler_params=pltpu.CompilerParams(
            dimension_semantics=("parallel",),   # megacore sharding on v7x
            vmem_limit_bytes=32 * 1024 * 1024,   # headroom for TB up to ~8192 (v5e)
        ),
    )(x_p, w1_p, b1_p, w2_p, b2_p)

    # Strip batch padding (no feature padding to strip anymore).
    return out[:B, :]


def init_params(key, input_dim=10, hidden_dim=5, output_dim=2):
    """Deterministic init mirroring nn.Linear's U(-1/sqrt(fan_in), 1/sqrt(fan_in))."""
    k1, k2, k3, k4 = jax.random.split(key, 4)
    bound1 = 1.0 / jnp.sqrt(jnp.float32(input_dim))
    bound2 = 1.0 / jnp.sqrt(jnp.float32(hidden_dim))
    w1 = jax.random.uniform(k1, (input_dim, hidden_dim), jnp.float32, -bound1, bound1)
    b1 = jax.random.uniform(k2, (hidden_dim,), jnp.float32, -bound1, bound1)
    w2 = jax.random.uniform(k3, (hidden_dim, output_dim), jnp.float32, -bound2, bound2)
    b2 = jax.random.uniform(k4, (output_dim,), jnp.float32, -bound2, bound2)
    return w1, b1, w2, b2


if __name__ == "__main__":
    key = jax.random.PRNGKey(0)
    k_x1, k_x2, k_p = jax.random.split(key, 3)

    input_dim, hidden_dim, output_dim = 10, 5, 2
    w1, b1, w2, b2 = init_params(k_p, input_dim, hidden_dim, output_dim)

    def ref(x):
        return jnp.maximum(x @ w1 + b1, 0.0) @ w2 + b2

    # Case 1: tiny batch (single tile) — force the Pallas path for the check.
    x1 = jax.random.normal(k_x1, (8, input_dim), jnp.float32)
    out1 = jax.block_until_ready(
        simple_model_forward(x1, w1, b1, w2, b2, small_batch_fallback=0))
    assert out1.shape == (8, output_dim)
    assert jnp.allclose(out1, ref(x1), atol=1e-5, rtol=1e-5)

    # Case 2: non-multiple-of-8 batch — exercises batch padding, the 2-tile
    # megacore guard, and the partial last grid tile.
    x2 = jax.random.normal(k_x2, (37, input_dim), jnp.float32)
    out2 = jax.block_until_ready(
        simple_model_forward(x2, w1, b1, w2, b2, small_batch_fallback=0))
    assert out2.shape == (37, output_dim)
    assert jnp.allclose(out2, ref(x2), atol=1e-5, rtol=1e-5)

    print("KERNEL_OK")
</pallas_src>

<mosaic_0001>
module attributes {stable_mosaic.version = 11 : i64} {
  func.func @mlp_kernel(%arg0: i32, %arg1: memref<8x10xf32, #tpu.memory_space<vmem>>, %arg2: memref<10x128xf32, #tpu.memory_space<vmem>>, %arg3: memref<1x128xf32, #tpu.memory_space<vmem>>, %arg4: memref<128x2xf32, #tpu.memory_space<vmem>>, %arg5: memref<1x2xf32, #tpu.memory_space<vmem>>, %arg6: memref<8x2xf32, #tpu.memory_space<vmem>>) attributes {dimension_semantics = [#tpu.dimension_semantics<parallel>], iteration_bounds = array<i64: 1>, scalar_prefetch = 0 : i64, scratch_operands = 0 : i64, tpu.core_type = #tpu.core_type<tc>, window_params = [{transform_indices = @transform_0, window_bounds = array<i64: 8, 10>}, {pipeline_mode = #tpu.pipeline_mode<synchronous>, transform_indices = @transform_1, window_bounds = array<i64: 10, 128>}, {pipeline_mode = #tpu.pipeline_mode<synchronous>, transform_indices = @transform_2, window_bounds = array<i64: 1, 128>}, {pipeline_mode = #tpu.pipeline_mode<synchronous>, transform_indices = @transform_3, window_bounds = array<i64: 128, 2>}, {pipeline_mode = #tpu.pipeline_mode<synchronous>, transform_indices = @transform_4, window_bounds = array<i64: 1, 2>}, {transform_indices = @transform_5, window_bounds = array<i64: 8, 2>}]} {
    %c0 = arith.constant 0 : index
    %c0_0 = arith.constant 0 : index
    %0 = vector.load %arg1[%c0, %c0_0] : memref<8x10xf32, #tpu.memory_space<vmem>>, vector<8x10xf32>
    %c0_1 = arith.constant 0 : index
    %c0_2 = arith.constant 0 : index
    %1 = vector.load %arg2[%c0_1, %c0_2] : memref<10x128xf32, #tpu.memory_space<vmem>>, vector<10x128xf32>
    %cst = arith.constant dense<0.000000e+00> : vector<8x128xf32>
    %2 = tpu.matmul %0, %1, %cst {dimension_numbers = #tpu.dot_dimension_numbers<[1], [0], [0], [1], [0, 0, 1, 1], [], []>} : vector<8x10xf32>, vector<10x128xf32>, vector<8x128xf32> -> vector<8x128xf32>
    %c0_3 = arith.constant 0 : index
    %c0_4 = arith.constant 0 : index
    %3 = vector.load %arg3[%c0_3, %c0_4] : memref<1x128xf32, #tpu.memory_space<vmem>>, vector<1x128xf32>
    %4 = vector.broadcast %3 : vector<1x128xf32> to vector<8x128xf32>
    %5 = arith.addf %2, %4 : vector<8x128xf32>
    %cst_5 = arith.constant 0.000000e+00 : f32
    %6 = vector.broadcast %cst_5 : f32 to vector<8x128xf32>
    %7 = arith.maximumf %5, %6 : vector<8x128xf32>
    %c0_6 = arith.constant 0 : index
    %c0_7 = arith.constant 0 : index
    %8 = vector.load %arg4[%c0_6, %c0_7] : memref<128x2xf32, #tpu.memory_space<vmem>>, vector<128x2xf32>
    %cst_8 = arith.constant dense<0.000000e+00> : vector<8x2xf32>
    %9 = tpu.matmul %7, %8, %cst_8 {dimension_numbers = #tpu.dot_dimension_numbers<[1], [0], [0], [1], [0, 0, 1, 1], [], []>} : vector<8x128xf32>, vector<128x2xf32>, vector<8x2xf32> -> vector<8x2xf32>
    %c0_9 = arith.constant 0 : index
    %c0_10 = arith.constant 0 : index
    %10 = vector.load %arg5[%c0_9, %c0_10] : memref<1x2xf32, #tpu.memory_space<vmem>>, vector<1x2xf32>
    %11 = vector.broadcast %10 : vector<1x2xf32> to vector<8x2xf32>
    %12 = arith.addf %9, %11 : vector<8x2xf32>
    %c0_11 = arith.constant 0 : index
    %c0_12 = arith.constant 0 : index
    %13 = vector.load %arg6[%c0_11, %c0_12] : memref<8x2xf32, #tpu.memory_space<vmem>>, vector<8x2xf32>
    tpu.vector_store %arg6[%c0_11, %c0_12], %12 {strides = array<i32>} : memref<8x2xf32, #tpu.memory_space<vmem>>, vector<8x2xf32>,
    return
  }
  func.func @transform_0(%arg0: i32) -> (i32, i32) {
    %c0_i32 = arith.constant 0 : i32
    %c0_i32_0 = arith.constant 0 : i32
    return %arg0, %c0_i32 : i32, i32
  }
  func.func @transform_1(%arg0: i32) -> (i32, i32) {
    %c0_i32 = arith.constant 0 : i32
    %c0_i32_0 = arith.constant 0 : i32
    %c0_i32_1 = arith.constant 0 : i32
    return %c0_i32, %c0_i32_0 : i32, i32
  }
  func.func @transform_2(%arg0: i32) -> (i32, i32) {
    %c0_i32 = arith.constant 0 : i32
    %c0_i32_0 = arith.constant 0 : i32
    %c0_i32_1 = arith.constant 0 : i32
    return %c0_i32, %c0_i32_0 : i32, i32
  }
  func.func @transform_3(%arg0: i32) -> (i32, i32) {
    %c0_i32 = arith.constant 0 : i32
    %c0_i32_0 = arith.constant 0 : i32
    %c0_i32_1 = arith.constant 0 : i32
    return %c0_i32, %c0_i32_0 : i32, i32
  }
  func.func @transform_4(%arg0: i32) -> (i32, i32) {
    %c0_i32 = arith.constant 0 : i32
    %c0_i32_0 = arith.constant 0 : i32
    %c0_i32_1 = arith.constant 0 : i32
    return %c0_i32, %c0_i32_0 : i32, i32
  }
  func.func @transform_5(%arg0: i32) -> (i32, i32) {
    %c0_i32 = arith.constant 0 : i32
    %c0_i32_0 = arith.constant 0 : i32
    return %arg0, %c0_i32 : i32, i32
  }
}

</mosaic_0001>

<llo_original>
// kernel: tpu_custom_call.1
$region0: #{tpu_custom_call.1}
  #allocation0 [shape = 'u32[]', space=smem, size = 0x4, offset = 0x4, fixed_abs, tag = 'smem constant byte address 0x4 - core index']
  #allocation1 [shape = 'u32[72,128]{1,0:T(1,128)}', space=vmem, size = 0x9000, scoped, tag = 'internal scratch']
  %s0 = inlined_call_operand.vmem [shape: f32[8,10], index: 0, kind: input, shape index: {}]
  %s1 = inlined_call_operand.vmem [shape: f32[10,128], index: 1, kind: input, shape index: {}]
  %s2 = inlined_call_operand.vmem [shape: f32[1,128], index: 2, kind: input, shape index: {}]
  %s3 = inlined_call_operand.vmem [shape: f32[128,2], index: 3, kind: input, shape index: {}]
  %s4 = inlined_call_operand.vmem [shape: f32[1,2], index: 4, kind: input, shape index: {}]
  %s5 = inlined_call_operand.vmem [shape: f32[8,2], index: 5, kind: output, shape index: {}]
  %s6 = sld [smem:[#allocation0]]
  $region30: #{tpu_custom_call.1} parent=0
    _
  %s8 = ssub.s32 1, %s6
  %s9 = scalar_select 0, %s8, %s6
  // Predicated region
  $region2: #{tpu_custom_call.1} parent=0 // pred_check
    _
  $region3: #{tpu_custom_call.1} parent=0 // pred_check_branch
    %11 = sbr.rel (0) target = $region5
  $region4: #{tpu_custom_call.1} parent=0 // pred_region
    _
  $region5: #{tpu_custom_call.1} parent=0 // pred_fallthru
    _
  // Predicated region
  $region6: #{tpu_custom_call.1} parent=0 // pred_check
    _
  $region7: #{tpu_custom_call.1} parent=0 // pred_check_branch
    %13 = sbr.rel (0) target = $region9
  $region8: #{tpu_custom_call.1} parent=0 // pred_region
    _
  $region9: #{tpu_custom_call.1} parent=0 // pred_fallthru
    _
  // Predicated region
  $region10: #{tpu_custom_call.1} parent=0 // pred_check
    _
  $region11: #{tpu_custom_call.1} parent=0 // pred_check_branch
    %15 = sbr.rel (0) target = $region13
  $region12: #{tpu_custom_call.1} parent=0 // pred_region
    _
  $region13: #{tpu_custom_call.1} parent=0 // pred_fallthru
    _
  // Predicated region
  $region14: #{tpu_custom_call.1} parent=0 // pred_check
    _
  $region15: #{tpu_custom_call.1} parent=0 // pred_check_branch
    %17 = sbr.rel (0) target = $region17
  $region16: #{tpu_custom_call.1} parent=0 // pred_region
    _
  $region17: #{tpu_custom_call.1} parent=0 // pred_fallthru
    _
  // Predicated region
  $region18: #{tpu_custom_call.1} parent=0 // pred_check
    _
  $region19: #{tpu_custom_call.1} parent=0 // pred_check_branch
    %19 = sbr.rel (0) target = $region21
  $region20: #{tpu_custom_call.1} parent=0 // pred_region
    _
  $region21: #{tpu_custom_call.1} parent=0 // pred_fallthru
    _
  %v20 = vld [vmem:[%s0] sm:$0xff]
  %v21 = vld [vmem:[%s1] sm:$0xff]
  %v22 = vld [vmem:[%s1 + $0x8] sm:$0x3]
  %v23 = vld [vmem:[%s2] sm:$0x1]
  %v25 = vperm.slane %v23, 0
  %vm27 = vcmask 80896
  %v29 = vsel %vm27, %v20, 0
  %vm31 = vcmask 1041408
  %v33 = vsel %vm31, %v22, 0
  %35 = vmatpush.msra.mxu0 0.0
  %36 = vmatpush.msra.mxu0 0.0
  %37 = vmatpush.msra.mxu0 0.0
  %38 = vmatpush.msra.mxu0 0.0
  %39 = vmatpush.msra.mxu0 0.0
  %40 = vmatpush.msra.mxu0 0.0
  %41 = vmatpush.msra.mxu0 0.0
  %42 = vmatpush.msra.mxu0 0.0
  %43 = vmatpush.msra.mxu0 0.0
  %44 = vmatpush.msra.mxu0 0.0
  %45 = vmatpush.msra.mxu0 0.0
  %46 = vmatpush.msra.mxu0 0.0
  %47 = vmatpush.msra.mxu0 0.0
  %48 = vmatpush.msra.mxu0 0.0
  %49 = vmatpush.msra.mxu0 %v33
  %50 = vmatpush.msra.mxu0 %v21
  %51 = vmatmul.f32.gmra.mxu0 %v29
  %v52 = vpop.f32.mrf.mxu0
  %v53 = vadd.f32 %v25, %v52
  %54 = vdwg.mxu0
  %v55 = vmax.f32 %v53, 0.0
  %v56 = vld [vmem:[%s3] sm:$0xff]
  %v57 = vld [vmem:[%s3 + $0x8] sm:$0xff]
  %v58 = vld [vmem:[%s3 + $0x10] sm:$0xff]
  %v59 = vld [vmem:[%s3 + $0x18] sm:$0xff]
  %v60 = vld [vmem:[%s3 + $0x20] sm:$0xff]
  %v61 = vld [vmem:[%s3 + $0x28] sm:$0xff]
  %v62 = vld [vmem:[%s3 + $0x30] sm:$0xff]
  %v63 = vld [vmem:[%s3 + $0x38] sm:$0xff]
  %v64 = vld [vmem:[%s3 + $0x40] sm:$0xff]
  %v65 = vld [vmem:[%s3 + $0x48] sm:$0xff]
  %v66 = vld [vmem:[%s3 + $0x50] sm:$0xff]
  %v67 = vld [vmem:[%s3 + $0x58] sm:$0xff]
  %v68 = vld [vmem:[%s3 + $0x60] sm:$0xff]
  %v69 = vld [vmem:[%s3 + $0x68] sm:$0xff]
  %v70 = vld [vmem:[%s3 + $0x70] sm:$0xff]
  %v71 = vld [vmem:[%s3 + $0x78] sm:$0xff]
  %v72 = vld [vmem:[%s4] sm:$0x1]
  %v74 = vperm.slane %v72, 0
  %76 = vmatpush.msra.mxu0 %v71
  %77 = vmatpush.msra.mxu0 %v70
  %78 = vmatpush.msra.mxu0 %v69
  %79 = vmatpush.msra.mxu0 %v68
  %80 = vmatpush.msra.mxu0 %v67
  %81 = vmatpush.msra.mxu0 %v66
  %82 = vmatpush.msra.mxu0 %v65
  %83 = vmatpush.msra.mxu0 %v64
  %84 = vmatpush.msra.mxu0 %v63
  %85 = vmatpush.msra.mxu0 %v62
  %86 = vmatpush.msra.mxu0 %v61
  %87 = vmatpush.msra.mxu0 %v60
  %88 = vmatpush.msra.mxu0 %v59
  %89 = vmatpush.msra.mxu0 %v58
  %90 = vmatpush.msra.mxu0 %v57
  %91 = vmatpush.msra.mxu0 %v56
  %92 = vmatmul.f32.gmra.mxu0 %v55
  %v93 = vpop.f32.mrf.mxu0
  %v94 = vadd.f32 %v74, %v93
  %95 = vdwg.mxu0
  %vm96 = vcmask 15360
  %97 = vst.msk [vmem:[%s5] sm:$0xff] %vm96, %v94
  // Predicated region
  $region22: #{tpu_custom_call.1} parent=0 // pred_check
    _
  $region23: #{tpu_custom_call.1} parent=0 // pred_check_branch
    %99 = sbr.rel (0) target = $region25
  $region24: #{tpu_custom_call.1} parent=0 // pred_region
    _
  $region25: #{tpu_custom_call.1} parent=0 // pred_fallthru
    _
  // Predicated region
  $region26: #{tpu_custom_call.1} parent=0 // pred_check
    _
  $region27: #{tpu_custom_call.1} parent=0 // pred_check_branch
    %101 = sbr.rel (0) target = $region29
  $region28: #{tpu_custom_call.1} parent=0 // pred_region
    _
  $region29: #{tpu_custom_call.1} parent=0 // pred_fallthru
    _

</llo_original>
